<compile_context>
chip_gen: v5e
topology: v5e:2x2
jax: 0.10.0
libtpu: 0.0.40
codegen_flags: <defaults>
</compile_context>

<pallas_src>
import jax
import jax.numpy as jnp
from jax.experimental import pallas as pl
from jax.experimental.pallas import tpu as pltpu

EPS = 1e-5  # PyTorch BatchNorm2d default eps


def _round_up(x, m):
    return ((x + m - 1) // m) * m


def _fold_bn(conv_bias, gamma, beta, mean, var):
    """Fold conv bias + eval-mode BN into per-channel (scale, shift)."""
    scale = (gamma / jnp.sqrt(var + EPS)).astype(jnp.float32)
    shift = (beta + (conv_bias - mean) * scale).astype(jnp.float32)
    return scale, shift


def make_resblock_kernel(Nb, Ci, Co, Rp, Wp):
    """Fused residual block for Nb images per grid step.

    Layout inside the kernel (channels on sublanes, flat padded spatial on lanes):
      x_ref   : (Nb, 9*Ci, Rp)  conv1 im2col built in the wrapper
      w1_ref  : (Co, 9*Ci)      conv1 taps, BN1 scale folded in
      w2_ref  : (Co, 9*Co+Ci)   conv2 taps + 1x1 shortcut, BN scales folded in
      bias_ref: (Co, 2)         col 0 = bn1 shift, col 1 = bn2 shift + shortcut shift
      mask_ref: (1, Rp)         zeroes junk columns / tail lanes of conv1's output
      o_ref   : (Nb, Co, Rp)
      ext_ref : (9*Co+Ci, Rp)   VMEM scratch: conv2 im2col + shortcut rows
    """
    offs = tuple(dy * Wp + dx for dy in range(3) for dx in range(3))
    center = Wp + 1
    taps_rows = 9 * Co

    def kernel(x_ref, w1_ref, w2_ref, bias_ref, mask_ref, o_ref, ext_ref):
        w1 = w1_ref[...]                      # (Co, 9*Ci)
        w2 = w2_ref[...]                      # (Co, 9*Co+Ci)
        b1 = bias_ref[:, 0:1]                 # (Co, 1)
        b2 = bias_ref[:, 1:2]                 # (Co, 1)
        mask = mask_ref[...]                  # (1, Rp)

        # Zero only the static per-tap border lanes of the im2col scratch, once
        # per grid step (not gated on program_id -> safe with parallel grid and
        # per-core scratch).  The per-image data writes below never touch them.
        for t in range(9):
            d = offs[t] - center
            r0 = t * Co
            if d > 0:
                ext_ref[r0:r0 + Co, Rp - d:Rp] = jnp.zeros((Co, d), jnp.float32)
            elif d < 0:
                nd = -d
                ext_ref[r0:r0 + Co, 0:nd] = jnp.zeros((Co, nd), jnp.float32)

        for n in range(Nb):                   # static loop -> fully unrolled
            # ---- conv1 (3x3, pad=1) + bn1 + relu: ONE MXU dot, K = 9*Ci ------
            acc1 = jnp.dot(w1, x_ref[n], preferred_element_type=jnp.float32)
            out1 = jnp.maximum(acc1 + b1, 0.0) * mask        # (Co, Rp)

            # ---- build conv2's im2col: 9 shifted sublane-block writes --------
            for t in range(9):
                d = offs[t] - center
                r0 = t * Co
                if d > 0:
                    ext_ref[r0:r0 + Co, 0:Rp - d] = out1[:, d:Rp]
                elif d == 0:
                    ext_ref[r0:r0 + Co, :] = out1
                else:
                    nd = -d
                    ext_ref[r0:r0 + Co, nd:Rp] = out1[:, 0:Rp - nd]

            # ---- shortcut rows: x's center tap (tap 4 block of the im2col) ---
            ext_ref[taps_rows:taps_rows + Ci, :] = x_ref[n, 4 * Ci:5 * Ci, :]

            # ---- conv2 + bn2 + shortcut + final relu: ONE dot, K = 9*Co+Ci ---
            acc2 = jnp.dot(w2, ext_ref[...], preferred_element_type=jnp.float32)
            o_ref[n] = jnp.maximum(acc2 + b2, 0.0)           # lane-dense (Co, Rp)

    return kernel


def residual_block(x_nchw, p):
    """Pallas implementation. Input/output are NCHW like PyTorch."""
    N, Cin, H, W = x_nchw.shape
    Cout = p["w1"].shape[0]
    if p.get("ws") is None:
        assert Cin == Cout, "identity shortcut requires in_channels == out_channels"

    Wp = W + 2                                # padded row width
    R = H * Wp                                # flattened compute length per image
    Rp = _round_up(R, 128)                    # lane-dense compute/store width
    center = Wp + 1
    Ci = _round_up(Cin, 8)
    Co = _round_up(Cout, 8)
    offs = tuple(dy * Wp + dx for dy in range(3) for dx in range(3))
    Lbuf = offs[-1] + Rp                      # flat length needed for the widest tap slice
    K1 = 9 * Ci
    K2 = 9 * Co + Ci

    # --- input: spatial zero-pad by 1, flatten, channel-pad, im2col in HBM ----
    x = x_nchw.astype(jnp.float32)
    xflat = jnp.pad(x, ((0, 0), (0, 0), (1, 1), (1, 1))).reshape(N, Cin, (H + 2) * Wp)
    xflat = jnp.pad(xflat, ((0, 0), (0, Ci - Cin), (0, Lbuf - (H + 2) * Wp)))
    x_im2col = jnp.concatenate([xflat[:, :, o:o + Rp] for o in offs], axis=1)  # (N, 9*Ci, Rp)

    # --- fold BN into (scale, shift); scale goes into the tap weights ---------
    s1, b1 = _fold_bn(p["b1"], p["g1"], p["be1"], p["m1"], p["v1"])
    s2, b2 = _fold_bn(p["b2"], p["g2"], p["be2"], p["m2"], p["v2"])

    def taps_matrix(w, cin, cin_pad, scale):   # (Cout,cin,3,3) -> (Co, 9*cin_pad)
        t = jnp.transpose(w.astype(jnp.float32), (2, 3, 1, 0)).reshape(9, cin, Cout)
        t = jnp.pad(t, ((0, 0), (0, cin_pad - cin), (0, Co - Cout)))
        return t.reshape(9 * cin_pad, Co).T * jnp.pad(scale, (0, Co - Cout))[:, None]

    W1 = taps_matrix(p["w1"], Cin, Ci, s1)               # (Co, 9*Ci)
    W2 = taps_matrix(p["w2"], Cout, Co, s2)              # (Co, 9*Co)

    if p.get("ws") is not None:
        ss, bs = _fold_bn(p["bs"], p["gs"], p["bes"], p["ms"], p["vs"])
        Ws = p["ws"][:, :, 0, 0].astype(jnp.float32) * ss[:, None]   # (Cout, Cin)
        Ws = jnp.pad(Ws, ((0, Co - Cout), (0, Ci - Cin)))
        bsc = jnp.pad(bs, (0, Co - Cout))
    else:  # identity shortcut folded as eye / 0 shift
        Ws = jnp.pad(jnp.eye(Cin, dtype=jnp.float32), ((0, Co - Cin), (0, Ci - Cin)))
        bsc = jnp.zeros((Co,), jnp.float32)

    W2ext = jnp.concatenate([W2, Ws], axis=1)            # (Co, 9*Co + Ci)
    b1p = jnp.pad(b1, (0, Co - Cout))
    b2p = jnp.pad(b2, (0, Co - Cout)) + bsc              # conv2 + shortcut shifts combined
    bias = jnp.stack([b1p, b2p], axis=1)                 # (Co, 2)

    # lane mask: zero the 2 junk columns per flattened row and the tail [R, Rp)
    j = jnp.arange(Rp, dtype=jnp.int32)
    mask = ((j < R) & (j % Wp < W)).astype(jnp.float32).reshape(1, Rp)

    # Batch handling: Nb images per step.  Even N -> 2 parallel steps so both
    # TensorCores on v7x get work (neutral on single-TC v5e/v6e); otherwise
    # collapse everything into one step to amortize per-step pipeline overhead.
    grid_steps = 2 if (N % 2 == 0 and N >= 2) else 1
    Nb = N // grid_steps

    # VMEM budget (per step, double-buffered inputs): well under the 32 MiB
    # default scoped limit on all generations at these sizes.
    out = pl.pallas_call(
        make_resblock_kernel(Nb, Ci, Co, Rp, Wp),
        out_shape=jax.ShapeDtypeStruct((N, Co, Rp), jnp.float32),
        grid_spec=pltpu.PrefetchScalarGridSpec(
            num_scalar_prefetch=0,
            grid=(grid_steps,),
            in_specs=[
                pl.BlockSpec((Nb, K1, Rp), lambda g: (g, 0, 0)),   # conv1 im2col
                pl.BlockSpec((Co, K1), lambda g: (0, 0)),          # conv1 taps (BN folded)
                pl.BlockSpec((Co, K2), lambda g: (0, 0)),          # conv2 taps + shortcut
                pl.BlockSpec((Co, 2), lambda g: (0, 0)),           # packed shifts
                pl.BlockSpec((1, Rp), lambda g: (0, 0)),           # junk-lane mask
            ],
            out_specs=pl.BlockSpec((Nb, Co, Rp), lambda g: (g, 0, 0)),
            scratch_shapes=[pltpu.VMEM((K2, Rp), jnp.float32)],    # conv2 im2col scratch
        ),
        compiler_params=pltpu.CompilerParams(dimension_semantics=("parallel",)),
    )(x_im2col, W1, W2ext, bias, mask)

    # (N, Co, Rp) -> drop tail lanes / junk columns / padded channels -> NCHW
    return out[:, :Cout, :R].reshape(N, Cout, H, Wp)[:, :, :, :W]


# --------------------- pure-JAX reference (for verification) ---------------------
def reference_resblock(x, p):
    def conv(x, w, b, pad):
        y = jax.lax.conv_general_dilated(
            x, w, window_strides=(1, 1), padding=[(pad, pad), (pad, pad)],
            dimension_numbers=("NCHW", "OIHW", "NCHW"),
            precision=jax.lax.Precision.HIGHEST)
        return y + b[None, :, None, None]

    def bn(x, g, be, m, v):
        return (x - m[None, :, None, None]) * (
            g[None, :, None, None] / jnp.sqrt(v[None, :, None, None] + EPS)
        ) + be[None, :, None, None]

    out = jax.nn.relu(bn(conv(x, p["w1"], p["b1"], 1), p["g1"], p["be1"], p["m1"], p["v1"]))
    out = bn(conv(out, p["w2"], p["b2"], 1), p["g2"], p["be2"], p["m2"], p["v2"])
    if p.get("ws") is not None:
        sc = bn(conv(x, p["ws"], p["bs"], 0), p["gs"], p["bes"], p["ms"], p["vs"])
    else:
        sc = x
    return jax.nn.relu(out + sc)


if __name__ == "__main__":
    key = jax.random.PRNGKey(0)
    N, Cin, Cout, H, W = 2, 4, 8, 16, 16
    ks = jax.random.split(key, 20)

    p = {
        "w1": jax.random.normal(ks[0], (Cout, Cin, 3, 3), jnp.float32) * 0.2,
        "b1": jax.random.normal(ks[1], (Cout,), jnp.float32) * 0.1,
        "g1": jax.random.uniform(ks[2], (Cout,), jnp.float32, 0.5, 1.5),
        "be1": jax.random.normal(ks[3], (Cout,), jnp.float32) * 0.1,
        "m1": jax.random.normal(ks[4], (Cout,), jnp.float32) * 0.1,
        "v1": jax.random.uniform(ks[5], (Cout,), jnp.float32, 0.5, 1.5),
        "w2": jax.random.normal(ks[6], (Cout, Cout, 3, 3), jnp.float32) * 0.2,
        "b2": jax.random.normal(ks[7], (Cout,), jnp.float32) * 0.1,
        "g2": jax.random.uniform(ks[8], (Cout,), jnp.float32, 0.5, 1.5),
        "be2": jax.random.normal(ks[9], (Cout,), jnp.float32) * 0.1,
        "m2": jax.random.normal(ks[10], (Cout,), jnp.float32) * 0.1,
        "v2": jax.random.uniform(ks[11], (Cout,), jnp.float32, 0.5, 1.5),
        # Cin != Cout -> shortcut = 1x1 conv + BN
        "ws": jax.random.normal(ks[12], (Cout, Cin, 1, 1), jnp.float32) * 0.2,
        "bs": jax.random.normal(ks[13], (Cout,), jnp.float32) * 0.1,
        "gs": jax.random.uniform(ks[14], (Cout,), jnp.float32, 0.5, 1.5),
        "bes": jax.random.normal(ks[15], (Cout,), jnp.float32) * 0.1,
        "ms": jax.random.normal(ks[16], (Cout,), jnp.float32) * 0.1,
        "vs": jax.random.uniform(ks[17], (Cout,), jnp.float32, 0.5, 1.5),
    }
    x = jax.random.normal(ks[18], (N, Cin, H, W), jnp.float32)

    out = jax.block_until_ready(residual_block(x, p))
    ref = jax.block_until_ready(reference_resblock(x, p))

    assert out.shape == (N, Cout, H, W), out.shape
    err = float(jnp.max(jnp.abs(out - ref)))
    assert jnp.allclose(out, ref, atol=1e-3, rtol=1e-3), err
    print("KERNEL_OK")
</pallas_src>

<mosaic_0001>
module attributes {stable_mosaic.version = 11 : i64} {
  func.func @kernel(%arg0: i32, %arg1: memref<1x72x384xf32, #tpu.memory_space<vmem>>, %arg2: memref<8x72xf32, #tpu.memory_space<vmem>>, %arg3: memref<8x80xf32, #tpu.memory_space<vmem>>, %arg4: memref<8x2xf32, #tpu.memory_space<vmem>>, %arg5: memref<1x384xf32, #tpu.memory_space<vmem>>, %arg6: memref<1x8x384xf32, #tpu.memory_space<vmem>>, %arg7: memref<80x384xf32, #tpu.memory_space<vmem>>) attributes {dimension_semantics = [#tpu.dimension_semantics<parallel>], iteration_bounds = array<i64: 2>, scalar_prefetch = 0 : i64, scratch_operands = 1 : i64, tpu.core_type = #tpu.core_type<tc>, window_params = [{transform_indices = @transform_0, window_bounds = array<i64: 1, 72, 384>}, {pipeline_mode = #tpu.pipeline_mode<synchronous>, transform_indices = @transform_1, window_bounds = array<i64: 8, 72>}, {pipeline_mode = #tpu.pipeline_mode<synchronous>, transform_indices = @transform_2, window_bounds = array<i64: 8, 80>}, {pipeline_mode = #tpu.pipeline_mode<synchronous>, transform_indices = @transform_3, window_bounds = array<i64: 8, 2>}, {pipeline_mode = #tpu.pipeline_mode<synchronous>, transform_indices = @transform_4, window_bounds = array<i64: 1, 384>}, {transform_indices = @transform_5, window_bounds = array<i64: 1, 8, 384>}]} {
    %c0 = arith.constant 0 : index
    %c0_0 = arith.constant 0 : index
    %0 = vector.load %arg2[%c0, %c0_0] : memref<8x72xf32, #tpu.memory_space<vmem>>, vector<8x72xf32>
    %c0_1 = arith.constant 0 : index
    %c0_2 = arith.constant 0 : index
    %1 = vector.load %arg3[%c0_1, %c0_2] : memref<8x80xf32, #tpu.memory_space<vmem>>, vector<8x80xf32>
    %c0_3 = arith.constant 0 : index
    %c0_4 = arith.constant 0 : index
    %2 = vector.load %arg4[%c0_3, %c0_4] : memref<8x2xf32, #tpu.memory_space<vmem>>, vector<8x1xf32>
    %c0_5 = arith.constant 0 : index
    %c1 = arith.constant 1 : index
    %3 = vector.load %arg4[%c0_5, %c1] : memref<8x2xf32, #tpu.memory_space<vmem>>, vector<8x1xf32>
    %c0_6 = arith.constant 0 : index
    %c0_7 = arith.constant 0 : index
    %4 = vector.load %arg5[%c0_6, %c0_7] : memref<1x384xf32, #tpu.memory_space<vmem>>, vector<1x384xf32>
    %cst = arith.constant 0.000000e+00 : f32
    %5 = vector.broadcast %cst : f32 to vector<8x19xf32>
    %c0_8 = arith.constant 0 : index
    %c0_9 = arith.constant 0 : index
    %6 = vector.load %arg7[%c0_8, %c0_9] : memref<80x384xf32, #tpu.memory_space<vmem>>, vector<8x19xf32>
    tpu.vector_store %arg7[%c0_8, %c0_9], %5 {strides = array<i32>} : memref<80x384xf32, #tpu.memory_space<vmem>>, vector<8x19xf32>,
    %cst_10 = arith.constant 0.000000e+00 : f32
    %7 = vector.broadcast %cst_10 : f32 to vector<8x18xf32>
    %c8 = arith.constant 8 : index
    %c0_11 = arith.constant 0 : index
    %8 = vector.load %arg7[%c8, %c0_11] : memref<80x384xf32, #tpu.memory_space<vmem>>, vector<8x18xf32>
    tpu.vector_store %arg7[%c8, %c0_11], %7 {strides = array<i32>} : memref<80x384xf32, #tpu.memory_space<vmem>>, vector<8x18xf32>,
    %cst_12 = arith.constant 0.000000e+00 : f32
    %9 = vector.broadcast %cst_12 : f32 to vector<8x17xf32>
    %c16 = arith.constant 16 : index
    %c0_13 = arith.constant 0 : index
    %10 = vector.load %arg7[%c16, %c0_13] : memref<80x384xf32, #tpu.memory_space<vmem>>, vector<8x17xf32>
    tpu.vector_store %arg7[%c16, %c0_13], %9 {strides = array<i32>} : memref<80x384xf32, #tpu.memory_space<vmem>>, vector<8x17xf32>,
    %cst_14 = arith.constant 0.000000e+00 : f32
    %11 = vector.broadcast %cst_14 : f32 to vector<8x1xf32>
    %c24 = arith.constant 24 : index
    %c0_15 = arith.constant 0 : index
    %12 = vector.load %arg7[%c24, %c0_15] : memref<80x384xf32, #tpu.memory_space<vmem>>, vector<8x1xf32>
    tpu.vector_store %arg7[%c24, %c0_15], %11 {strides = array<i32>} : memref<80x384xf32, #tpu.memory_space<vmem>>, vector<8x1xf32>,
    %cst_16 = arith.constant 0.000000e+00 : f32
    %13 = vector.broadcast %cst_16 : f32 to vector<8x1xf32>
    %c40 = arith.constant 40 : index
    %c383 = arith.constant 383 : index
    %14 = vector.load %arg7[%c40, %c383] : memref<80x384xf32, #tpu.memory_space<vmem>>, vector<8x1xf32>
    tpu.vector_store %arg7[%c40, %c383], %13 {strides = array<i32>} : memref<80x384xf32, #tpu.memory_space<vmem>>, vector<8x1xf32>,
    %cst_17 = arith.constant 0.000000e+00 : f32
    %15 = vector.broadcast %cst_17 : f32 to vector<8x17xf32>
    %c48 = arith.constant 48 : index
    %c367 = arith.constant 367 : index
    %16 = vector.load %arg7[%c48, %c367] : memref<80x384xf32, #tpu.memory_space<vmem>>, vector<8x17xf32>
    tpu.vector_store %arg7[%c48, %c367], %15 {strides = array<i32>} : memref<80x384xf32, #tpu.memory_space<vmem>>, vector<8x17xf32>,
    %cst_18 = arith.constant 0.000000e+00 : f32
    %17 = vector.broadcast %cst_18 : f32 to vector<8x18xf32>
    %c56 = arith.constant 56 : index
    %c366 = arith.constant 366 : index
    %18 = vector.load %arg7[%c56, %c366] : memref<80x384xf32, #tpu.memory_space<vmem>>, vector<8x18xf32>
    tpu.vector_store %arg7[%c56, %c366], %17 {strides = array<i32>} : memref<80x384xf32, #tpu.memory_space<vmem>>, vector<8x18xf32>,
    %cst_19 = arith.constant 0.000000e+00 : f32
    %19 = vector.broadcast %cst_19 : f32 to vector<8x19xf32>
    %c64 = arith.constant 64 : index
    %c365 = arith.constant 365 : index
    %20 = vector.load %arg7[%c64, %c365] : memref<80x384xf32, #tpu.memory_space<vmem>>, vector<8x19xf32>
    tpu.vector_store %arg7[%c64, %c365], %19 {strides = array<i32>} : memref<80x384xf32, #tpu.memory_space<vmem>>, vector<8x19xf32>,
    %c0_20 = arith.constant 0 : index
    %c0_21 = arith.constant 0 : index
    %c0_22 = arith.constant 0 : index
    %21 = vector.load %arg1[%c0_20, %c0_21, %c0_22] : memref<1x72x384xf32, #tpu.memory_space<vmem>>, vector<1x72x384xf32>
    %22 = vector.shape_cast %21 : vector<1x72x384xf32> to vector<72x384xf32>
    %cst_23 = arith.constant dense<0.000000e+00> : vector<8x384xf32>
    %23 = tpu.matmul %0, %22, %cst_23 {dimension_numbers = #tpu.dot_dimension_numbers<[1], [0], [0], [1], [0, 0, 1, 1], [], []>} : vector<8x72xf32>, vector<72x384xf32>, vector<8x384xf32> -> vector<8x384xf32>
    %24 = vector.broadcast %2 : vector<8x1xf32> to vector<8x384xf32>
    %25 = arith.addf %23, %24 : vector<8x384xf32>
    %cst_24 = arith.constant 0.000000e+00 : f32
    %26 = vector.broadcast %cst_24 : f32 to vector<8x384xf32>
    %27 = arith.maximumf %25, %26 : vector<8x384xf32>
    %28 = vector.broadcast %4 : vector<1x384xf32> to vector<8x384xf32>
    %29 = arith.mulf %27, %28 : vector<8x384xf32>
    %30 = vector.extract_strided_slice %29 {offsets = [0, 0], sizes = [8, 365], strides = [1, 1]} : vector<8x384xf32> to vector<8x365xf32>
    %c0_25 = arith.constant 0 : index
    %c19 = arith.constant 19 : index
    %31 = vector.load %arg7[%c0_25, %c19] : memref<80x384xf32, #tpu.memory_space<vmem>>, vector<8x365xf32>
    tpu.vector_store %arg7[%c0_25, %c19], %30 {strides = array<i32>} : memref<80x384xf32, #tpu.memory_space<vmem>>, vector<8x365xf32>,
    %32 = vector.extract_strided_slice %29 {offsets = [0, 0], sizes = [8, 366], strides = [1, 1]} : vector<8x384xf32> to vector<8x366xf32>
    %c8_26 = arith.constant 8 : index
    %c18 = arith.constant 18 : index
    %33 = vector.load %arg7[%c8_26, %c18] : memref<80x384xf32, #tpu.memory_space<vmem>>, vector<8x366xf32>
    tpu.vector_store %arg7[%c8_26, %c18], %32 {strides = array<i32>} : memref<80x384xf32, #tpu.memory_space<vmem>>, vector<8x366xf32>,
    %34 = vector.extract_strided_slice %29 {offsets = [0, 0], sizes = [8, 367], strides = [1, 1]} : vector<8x384xf32> to vector<8x367xf32>
    %c16_27 = arith.constant 16 : index
    %c17 = arith.constant 17 : index
    %35 = vector.load %arg7[%c16_27, %c17] : memref<80x384xf32, #tpu.memory_space<vmem>>, vector<8x367xf32>
    tpu.vector_store %arg7[%c16_27, %c17], %34 {strides = array<i32>} : memref<80x384xf32, #tpu.memory_space<vmem>>, vector<8x367xf32>,
    %36 = vector.extract_strided_slice %29 {offsets = [0, 0], sizes = [8, 383], strides = [1, 1]} : vector<8x384xf32> to vector<8x383xf32>
    %c24_28 = arith.constant 24 : index
    %c1_29 = arith.constant 1 : index
    %37 = vector.load %arg7[%c24_28, %c1_29] : memref<80x384xf32, #tpu.memory_space<vmem>>, vector<8x383xf32>
    tpu.vector_store %arg7[%c24_28, %c1_29], %36 {strides = array<i32>} : memref<80x384xf32, #tpu.memory_space<vmem>>, vector<8x383xf32>,
    %c32 = arith.constant 32 : index
    %c0_30 = arith.constant 0 : index
    %38 = vector.load %arg7[%c32, %c0_30] : memref<80x384xf32, #tpu.memory_space<vmem>>, vector<8x384xf32>
    tpu.vector_store %arg7[%c32, %c0_30], %29 {strides = array<i32>} : memref<80x384xf32, #tpu.memory_space<vmem>>, vector<8x384xf32>,
    %39 = vector.extract_strided_slice %29 {offsets = [0, 1], sizes = [8, 383], strides = [1, 1]} : vector<8x384xf32> to vector<8x383xf32>
    %c40_31 = arith.constant 40 : index
    %c0_32 = arith.constant 0 : index
    %40 = vector.load %arg7[%c40_31, %c0_32] : memref<80x384xf32, #tpu.memory_space<vmem>>, vector<8x383xf32>
    tpu.vector_store %arg7[%c40_31, %c0_32], %39 {strides = array<i32>} : memref<80x384xf32, #tpu.memory_space<vmem>>, vector<8x383xf32>,
    %41 = vector.extract_strided_slice %29 {offsets = [0, 17], sizes = [8, 367], strides = [1, 1]} : vector<8x384xf32> to vector<8x367xf32>
    %c48_33 = arith.constant 48 : index
    %c0_34 = arith.constant 0 : index
    %42 = vector.load %arg7[%c48_33, %c0_34] : memref<80x384xf32, #tpu.memory_space<vmem>>, vector<8x367xf32>
    tpu.vector_store %arg7[%c48_33, %c0_34], %41 {strides = array<i32>} : memref<80x384xf32, #tpu.memory_space<vmem>>, vector<8x367xf32>,
    %43 = vector.extract_strided_slice %29 {offsets = [0, 18], sizes = [8, 366], strides = [1, 1]} : vector<8x384xf32> to vector<8x366xf32>
    %c56_35 = arith.constant 56 : index
    %c0_36 = arith.constant 0 : index
    %44 = vector.load %arg7[%c56_35, %c0_36] : memref<80x384xf32, #tpu.memory_space<vmem>>, vector<8x366xf32>
    tpu.vector_store %arg7[%c56_35, %c0_36], %43 {strides = array<i32>} : memref<80x384xf32, #tpu.memory_space<vmem>>, vector<8x366xf32>,
    %45 = vector.extract_strided_slice %29 {offsets = [0, 19], sizes = [8, 365], strides = [1, 1]} : vector<8x384xf32> to vector<8x365xf32>
    %c64_37 = arith.constant 64 : index
    %c0_38 = arith.constant 0 : index
    %46 = vector.load %arg7[%c64_37, %c0_38] : memref<80x384xf32, #tpu.memory_space<vmem>>, vector<8x365xf32>
    tpu.vector_store %arg7[%c64_37, %c0_38], %45 {strides = array<i32>} : memref<80x384xf32, #tpu.memory_space<vmem>>, vector<8x365xf32>,
    %c0_39 = arith.constant 0 : index
    %c32_40 = arith.constant 32 : index
    %c0_41 = arith.constant 0 : index
    %47 = vector.load %arg1[%c0_39, %c32_40, %c0_41] : memref<1x72x384xf32, #tpu.memory_space<vmem>>, vector<1x8x384xf32>
    %48 = vector.shape_cast %47 : vector<1x8x384xf32> to vector<8x384xf32>
    %c72 = arith.constant 72 : index
    %c0_42 = arith.constant 0 : index
    %49 = vector.load %arg7[%c72, %c0_42] : memref<80x384xf32, #tpu.memory_space<vmem>>, vector<8x384xf32>
    tpu.vector_store %arg7[%c72, %c0_42], %48 {strides = array<i32>} : memref<80x384xf32, #tpu.memory_space<vmem>>, vector<8x384xf32>,
    %c0_43 = arith.constant 0 : index
    %c0_44 = arith.constant 0 : index
    %50 = vector.load %arg7[%c0_43, %c0_44] : memref<80x384xf32, #tpu.memory_space<vmem>>, vector<80x384xf32>
    %cst_45 = arith.constant dense<0.000000e+00> : vector<8x384xf32>
    %51 = tpu.matmul %1, %50, %cst_45 {dimension_numbers = #tpu.dot_dimension_numbers<[1], [0], [0], [1], [0, 0, 1, 1], [], []>} : vector<8x80xf32>, vector<80x384xf32>, vector<8x384xf32> -> vector<8x384xf32>
    %52 = vector.broadcast %3 : vector<8x1xf32> to vector<8x384xf32>
    %53 = arith.addf %51, %52 : vector<8x384xf32>
    %cst_46 = arith.constant 0.000000e+00 : f32
    %54 = vector.broadcast %cst_46 : f32 to vector<8x384xf32>
    %55 = arith.maximumf %53, %54 : vector<8x384xf32>
    %c0_47 = arith.constant 0 : index
    %c0_48 = arith.constant 0 : index
    %c0_49 = arith.constant 0 : index
    %56 = vector.load %arg6[%c0_47, %c0_48, %c0_49] : memref<1x8x384xf32, #tpu.memory_space<vmem>>, vector<1x8x384xf32>
    %57 = vector.shape_cast %56 : vector<1x8x384xf32> to vector<8x384xf32>
    %58 = vector.shape_cast %55 : vector<8x384xf32> to vector<1x8x384xf32>
    tpu.vector_store %arg6[%c0_47, %c0_48, %c0_49], %58 {strides = array<i32>} : memref<1x8x384xf32, #tpu.memory_space<vmem>>, vector<1x8x384xf32>,
    return
  }
  func.func @transform_0(%arg0: i32) -> (i32, i32, i32) {
    %c0_i32 = arith.constant 0 : i32
    %c0_i32_0 = arith.constant 0 : i32
    %c0_i32_1 = arith.constant 0 : i32
    return %arg0, %c0_i32, %c0_i32_0 : i32, i32, i32
  }
  func.func @transform_1(%arg0: i32) -> (i32, i32) {
    %c0_i32 = arith.constant 0 : i32
    %c0_i32_0 = arith.constant 0 : i32
    %c0_i32_1 = arith.constant 0 : i32
    return %c0_i32, %c0_i32_0 : i32, i32
  }
  func.func @transform_2(%arg0: i32) -> (i32, i32) {
    %c0_i32 = arith.constant 0 : i32
    %c0_i32_0 = arith.constant 0 : i32
    %c0_i32_1 = arith.constant 0 : i32
    return %c0_i32, %c0_i32_0 : i32, i32
  }
  func.func @transform_3(%arg0: i32) -> (i32, i32) {
    %c0_i32 = arith.constant 0 : i32
    %c0_i32_0 = arith.constant 0 : i32
    %c0_i32_1 = arith.constant 0 : i32
    return %c0_i32, %c0_i32_0 : i32, i32
  }
  func.func @transform_4(%arg0: i32) -> (i32, i32) {
    %c0_i32 = arith.constant 0 : i32
    %c0_i32_0 = arith.constant 0 : i32
    %c0_i32_1 = arith.constant 0 : i32
    return %c0_i32, %c0_i32_0 : i32, i32
  }
  func.func @transform_5(%arg0: i32) -> (i32, i32, i32) {
    %c0_i32 = arith.constant 0 : i32
    %c0_i32_0 = arith.constant 0 : i32
    %c0_i32_1 = arith.constant 0 : i32
    return %arg0, %c0_i32, %c0_i32_0 : i32, i32, i32
  }
}

</mosaic_0001>

<llo_original>
// kernel: tpu_custom_call.1
$region0: #{tpu_custom_call.1}
  #allocation0 [shape = 'u32[]', space=smem, size = 0x4, offset = 0x4, fixed_abs, tag = 'smem constant byte address 0x4 - core index']
  #allocation1 [shape = 'u32[72,128]{1,0:T(1,128)}', space=vmem, size = 0x9000, scoped, tag = 'internal scratch']
  #allocation2 [shape = 'f32[80,384]{1,0:T(8,128)}', space=vmem, size = 0x1e000, scoped, tag = 'scratch operand']
  %s0 = inlined_call_operand.hbm [shape: f32[2,72,384], index: 0, kind: input, shape index: {}]
  %s1 = inlined_call_operand.vmem [shape: f32[8,72], index: 1, kind: input, shape index: {}]
  %s2 = inlined_call_operand.hbm [shape: f32[8,80], index: 2, kind: input, shape index: {}]
  %s3 = inlined_call_operand.vmem [shape: f32[8,2], index: 3, kind: input, shape index: {}]
  %s4 = inlined_call_operand.hbm [shape: f32[1,384], index: 4, kind: input, shape index: {}]
  %s5 = inlined_call_operand.hbm [shape: f32[2,8,384], index: 5, kind: output, shape index: {}]
  %s6 = sld [smem:[#allocation0]]
  $region65: #{tpu_custom_call.1} parent=0
    _
  %s8 = ssub.s32 1, %s6
  %s9 = scalar_select 0, %s8, %s6
  $region1: #{tpu_custom_call.1} parent=0
    #allocation3 [shape = 'u8[221184]{0}', space=vmem, size = 0x36000, scoped, tag = 'input window, operand 0']
    #allocation4 [shape = 's32[2]{0}', space=sflag, size = 0x8, scoped, tag = 'scoped memory for tpu_custom_call.1']
    #allocation5 [shape = 's32[2]{0}', space=sflag, size = 0x8, scoped, tag = 'scoped memory for tpu_custom_call.1']
    #allocation6 [shape = 'u8[4096]{0}', space=vmem, size = 0x1000, scoped, tag = 'input window, operand 2, single buffered']
    #allocation7 [shape = 's32[1]{0}', space=sflag, size = 0x4, scoped, tag = 'scoped memory for tpu_custom_call.1']
    #allocation8 [shape = 'u8[1536]{0}', space=vmem, size = 0x800, scoped, tag = 'input window, operand 4, single buffered']
    #allocation9 [shape = 'u8[24576]{0}', space=vmem, size = 0x6000, scoped, tag = 'output window, operand 0']
    %10 = vsyncpa [#allocation4], 0
    %s11 = scalar_lea.sflag [#allocation4], 1
    %12 = vsyncpa %s11, 0
    %13 = vsyncpa [#allocation7], 0
    %14 = vsyncpa [#allocation5], 0
    %s15 = scalar_lea.sflag [#allocation5], 1
    %16 = vsyncpa %s15, 0
    loop: start=0, step=1, limit=4
    $region2: #{tpu_custom_call.1} parent=1 // loop_pre_header
      _
    $region3: #{tpu_custom_call.1} parent=1 // loop_header
      %s18 = sphi 0, %s22
      %p19 = scmp.ge.s32.totalorder %s18, 4
      %s28 = sphi 0, %s30
      %s31 = sphi 0, %s28
      %s32 = sphi 0, %s31
      %s48 = sphi 0, %s32
      %s52 = sphi 0, %s52
      %s54 = sphi 0, %s52
      %s55 = sphi 0, %s54
      %s69 = sphi 0, %s55
      %s73 = sphi 0, %s73
      %s75 = sphi 0, %s73
      %s76 = sphi 0, %s75
      %s90 = sphi 0, %s76
      %s94 = sphi 0, %s94
      %s96 = sphi 0, %s94
      %s97 = sphi 0, %s96
      %s111 = sphi 0, %s97
      %s115 = sphi 0, %s115
      %s117 = sphi 0, %s115
      %s118 = sphi 0, %s117
      %s132 = sphi 0, %s118
      %s138 = sphi 0, %s140
      %s141 = sphi 0, %s138
      %s142 = sphi 0, %s141
      %s158 = sphi 0, %s142
    $region4: #{tpu_custom_call.1} parent=1 // loop_header_branch
      %21 = sbr.rel (%p19) target = $region8
    $region5: #{tpu_custom_call.1} parent=1 // loop_body
      %s23 = ssub.s32 %s18, 1
      %s24 = ssub.s32 %s18, 2
      %s25 = sadd.s32 %s18, 1
      %s26 = ssub.s32 %s18, %s25
      %p27 = scmp.eq.s32.totalorder %s26, 0
      %s29 = sadd.s32 %s28, 1
      %s30 = scalar_select %p27, %s28, %s29
      %p33 = pneg %p27
      %p34 = scmp.eq.s32.totalorder %s18, 1
      %p35 = por %p33, %p34
      %p36 = scmp.ne.s32.totalorder %s28, %s31
      %p37 = scmp.eq.s32.totalorder %s18, 0
      %p38 = por %p36, %p37
      %p39 = scmp.ne.s32.totalorder %s28, %s31
      %p40 = scmp.eq.s32.totalorder %s23, 1
      %p41 = por %p39, %p40
      %p42 = scmp.ne.s32.totalorder %s31, %s32
      %p43 = scmp.eq.s32.totalorder %s23, 0
      %p44 = por %p42, %p43
      %p45 = scmp.ne.s32.totalorder %s31, %s32
      %p46 = scmp.eq.s32.totalorder %s24, 1
      %p47 = por %p45, %p46
      %p49 = scmp.ne.s32.totalorder %s32, %s48
      %p50 = scmp.eq.s32.totalorder %s24, 0
      %p51 = por %p49, %p50
      %s53 = sadd.s32 %s52, 1
      %p56 = scmp.eq.s32.totalorder %s18, 1
      %p57 = scmp.ne.s32.totalorder %s52, %s54
      %p58 = scmp.eq.s32.totalorder %s18, 0
      %p59 = por %p57, %p58
      %p60 = scmp.ne.s32.totalorder %s52, %s54
      %p61 = scmp.eq.s32.totalorder %s23, 1
      %p62 = por %p60, %p61
      %p63 = scmp.ne.s32.totalorder %s54, %s55
      %p64 = scmp.eq.s32.totalorder %s23, 0
      %p65 = por %p63, %p64
      %p66 = scmp.ne.s32.totalorder %s54, %s55
      %p67 = scmp.eq.s32.totalorder %s24, 1
      %p68 = por %p66, %p67
      %p70 = scmp.ne.s32.totalorder %s55, %s69
      %p71 = scmp.eq.s32.totalorder %s24, 0
      %p72 = por %p70, %p71
      %s74 = sadd.s32 %s73, 1
      %p77 = scmp.eq.s32.totalorder %s18, 1
      %p78 = scmp.ne.s32.totalorder %s73, %s75
      %p79 = scmp.eq.s32.totalorder %s18, 0
      %p80 = por %p78, %p79
      %p81 = scmp.ne.s32.totalorder %s73, %s75
      %p82 = scmp.eq.s32.totalorder %s23, 1
      %p83 = por %p81, %p82
      %p84 = scmp.ne.s32.totalorder %s75, %s76
      %p85 = scmp.eq.s32.totalorder %s23, 0
      %p86 = por %p84, %p85
      %p87 = scmp.ne.s32.totalorder %s75, %s76
      %p88 = scmp.eq.s32.totalorder %s24, 1
      %p89 = por %p87, %p88
      %p91 = scmp.ne.s32.totalorder %s76, %s90
      %p92 = scmp.eq.s32.totalorder %s24, 0
      %p93 = por %p91, %p92
      %s95 = sadd.s32 %s94, 1
      %p98 = scmp.eq.s32.totalorder %s18, 1
      %p99 = scmp.ne.s32.totalorder %s94, %s96
      %p100 = scmp.eq.s32.totalorder %s18, 0
      %p101 = por %p99, %p100
      %p102 = scmp.ne.s32.totalorder %s94, %s96
      %p103 = scmp.eq.s32.totalorder %s23, 1
      %p104 = por %p102, %p103
      %p105 = scmp.ne.s32.totalorder %s96, %s97
      %p106 = scmp.eq.s32.totalorder %s23, 0
      %p107 = por %p105, %p106
      %p108 = scmp.ne.s32.totalorder %s96, %s97
      %p109 = scmp.eq.s32.totalorder %s24, 1
      %p110 = por %p108, %p109
      %p112 = scmp.ne.s32.totalorder %s97, %s111
      %p113 = scmp.eq.s32.totalorder %s24, 0
      %p114 = por %p112, %p113
      %s116 = sadd.s32 %s115, 1
      %p119 = scmp.eq.s32.totalorder %s18, 1
      %p120 = scmp.ne.s32.totalorder %s115, %s117
      %p121 = scmp.eq.s32.totalorder %s18, 0
      %p122 = por %p120, %p121
      %p123 = scmp.ne.s32.totalorder %s115, %s117
      %p124 = scmp.eq.s32.totalorder %s23, 1
      %p125 = por %p123, %p124
      %p126 = scmp.ne.s32.totalorder %s117, %s118
      %p127 = scmp.eq.s32.totalorder %s23, 0
      %p128 = por %p126, %p127
      %p129 = scmp.ne.s32.totalorder %s117, %s118
      %p130 = scmp.eq.s32.totalorder %s24, 1
      %p131 = por %p129, %p130
      %p133 = scmp.ne.s32.totalorder %s118, %s132
      %p134 = scmp.eq.s32.totalorder %s24, 0
      %p135 = por %p133, %p134
      %s136 = ssub.s32 %s18, %s25
      %p137 = scmp.eq.s32.totalorder %s136, 0
      %s139 = sadd.s32 %s138, 1
      %s140 = scalar_select %p137, %s138, %s139
      %p143 = pneg %p137
      %p144 = scmp.eq.s32.totalorder %s18, 1
      %p145 = por %p143, %p144
      %p146 = scmp.ne.s32.totalorder %s138, %s141
      %p147 = scmp.eq.s32.totalorder %s18, 0
      %p148 = por %p146, %p147
      %p149 = scmp.ne.s32.totalorder %s138, %s141
      %p150 = scmp.eq.s32.totalorder %s23, 1
      %p151 = por %p149, %p150
      %p152 = scmp.ne.s32.totalorder %s141, %s142
      %p153 = scmp.eq.s32.totalorder %s23, 0
      %p154 = por %p152, %p153
      %p155 = scmp.ne.s32.totalorder %s141, %s142
      %p156 = scmp.eq.s32.totalorder %s24, 1
      %p157 = por %p155, %p156
      %p159 = scmp.ne.s32.totalorder %s142, %s158
      %p160 = scmp.eq.s32.totalorder %s24, 0
      %p161 = por %p159, %p160
      %p162 = scmp.le.s32.totalorder 1, %s18
      %p163 = scmp.lt.s32.totalorder %s18, 3
      %p164 = pnand %p162, %p163
      %p165 = pneg %p164
      // Predicated region
      $region9: #{tpu_custom_call.1} parent=5 // pred_check
        _
      $region10: #{tpu_custom_call.1} parent=5 // pred_check_branch
        %167 = sbr.rel (%p164) target = $region12
      $region11: #{tpu_custom_call.1} parent=5 // pred_region
        %s168 = ssub.s32 %s18, 1
        // Predicated region
        $region13: #{tpu_custom_call.1} parent=11 // pred_check
          %p169 = pneg %p65
        $region14: #{tpu_custom_call.1} parent=11 // pred_check_branch
          %171 = sbr.rel (%p169) target = $region16
        $region15: #{tpu_custom_call.1} parent=11 // pred_region
          _
        $region16: #{tpu_custom_call.1} parent=11 // pred_fallthru
          _
        // Predicated region
        $region17: #{tpu_custom_call.1} parent=11 // pred_check
          %p172 = pneg %p86
        $region18: #{tpu_custom_call.1} parent=11 // pred_check_branch
          %174 = sbr.rel (%p172) target = $region20
        $region19: #{tpu_custom_call.1} parent=11 // pred_region
          %176 = vsyncadd [#allocation7], 0
          %s178 = sshll.u32 %s2, 4
          %s179 = int_to_ptr.hbm [resolvable:$true] %s178
          %s180 = sshll.u32 [#allocation6], 4
          %s181 = int_to_ptr.vmem [resolvable:$true] %s180
          %183 = dma.hbm_to_vmem [thread:$0]  %s179, 128, %s181, [#allocation7]
        $region20: #{tpu_custom_call.1} parent=11 // pred_fallthru
          _
        // Predicated region
        $region21: #{tpu_custom_call.1} parent=11 // pred_check
          %p184 = pneg %p107
        $region22: #{tpu_custom_call.1} parent=11 // pred_check_branch
          %186 = sbr.rel (%p184) target = $region24
        $region23: #{tpu_custom_call.1} parent=11 // pred_region
          _
        $region24: #{tpu_custom_call.1} parent=11 // pred_fallthru
          _
        // Predicated region
        $region25: #{tpu_custom_call.1} parent=11 // pred_check
          %p187 = pneg %p128
        $region26: #{tpu_custom_call.1} parent=11 // pred_check_branch
          %189 = sbr.rel (%p187) target = $region28
        $region27: #{tpu_custom_call.1} parent=11 // pred_region
          %191 = vsyncadd [#allocation7], 0
          %s193 = sshll.u32 %s4, 4
          %s194 = int_to_ptr.hbm [resolvable:$true] %s193
          %s195 = sshll.u32 [#allocation8], 4
          %s196 = int_to_ptr.vmem [resolvable:$true] %s195
          %198 = dma.hbm_to_vmem [thread:$0]  %s194, 48, %s196, [#allocation7]
        $region28: #{tpu_custom_call.1} parent=11 // pred_fallthru
          _
      $region12: #{tpu_custom_call.1} parent=5 // pred_fallthru
        _
      %p199 = scmp.lt.s32.totalorder %s18, 2
      // Predicated region
      $region29: #{tpu_custom_call.1} parent=5 // pred_check
        %p200 = pneg %p199
      $region30: #{tpu_custom_call.1} parent=5 // pred_check_branch
        %202 = sbr.rel (%p200) target = $region32
      $region31: #{tpu_custom_call.1} parent=5 // pred_region
        // Predicated region
        $region33: #{tpu_custom_call.1} parent=31 // pred_check
          %p203 = pneg %p38
        $region34: #{tpu_custom_call.1} parent=31 // pred_check_branch
          %205 = sbr.rel (%p203) target = $region36
        $region35: #{tpu_custom_call.1} parent=31 // pred_region
          %s206 = sand.u32 %s28, 1
          %s207 = scalar_lea.sflag [#allocation4], %s206
          %s208 = sand.u32 %s28, 1
          %s209 = smul.addr %s208, 216
          %s210 = scalar_lea.vmem [#allocation3], %s209
          %212 = vsyncadd %s207, 0
          %s213 = smul.addr %s18, 27
          %s214 = smul.addr %s213, 8
          %s215 = scalar_lea.hbm %s0, %s214
          %s216 = sshll.u32 %s215, 4
          %s217 = int_to_ptr.hbm [resolvable:$true] %s216
          %s218 = sshll.u32 %s210, 4
          %s219 = int_to_ptr.vmem [resolvable:$true] %s218
          %224 = dma.hbm_to_vmem [thread:$0]  %s217, 3456, %s219, %s207, 384, 384, 24
        $region36: #{tpu_custom_call.1} parent=31 // pred_fallthru
          _
      $region32: #{tpu_custom_call.1} parent=5 // pred_fallthru
        _
      %p225 = scmp.le.s32.totalorder 1, %s18
      %p226 = scmp.lt.s32.totalorder %s18, 3
      %p227 = pnand %p225, %p226
      %p228 = pneg %p227
      // Predicated region
      $region37: #{tpu_custom_call.1} parent=5 // pred_check
        _
      $region38: #{tpu_custom_call.1} parent=5 // pred_check_branch
        %230 = sbr.rel (%p227) target = $region40
      $region39: #{tpu_custom_call.1} parent=5 // pred_region
        %s231 = ssub.s32 %s18, 1
        %s232 = sand.u32 %s31, 1
        %s233 = scalar_lea.sflag [#allocation4], %s232
        %s234 = sand.u32 %s31, 1
        %s235 = smul.addr %s234, 216
        %s236 = scalar_lea.vmem [#allocation3], %s235
        // Predicated region
        $region41: #{tpu_custom_call.1} parent=39 // pred_check
          %p237 = pneg %p44
        $region42: #{tpu_custom_call.1} parent=39 // pred_check_branch
          %239 = sbr.rel (%p237) target = $region44
        $region43: #{tpu_custom_call.1} parent=39 // pred_region
          %241 = dma.done %s233, 3456
        $region44: #{tpu_custom_call.1} parent=39 // pred_fallthru
          _
        // Predicated region
        $region45: #{tpu_custom_call.1} parent=39 // pred_check
          %p242 = pneg %p86
        $region46: #{tpu_custom_call.1} parent=39 // pred_check_branch
          %244 = sbr.rel (%p242) target = $region48
        $region47: #{tpu_custom_call.1} parent=39 // pred_region
          %246 = dma.done [#allocation7], 128
        $region48: #{tpu_custom_call.1} parent=39 // pred_fallthru
          _
        // Predicated region
        $region49: #{tpu_custom_call.1} parent=39 // pred_check
          %p247 = pneg %p128
        $region50: #{tpu_custom_call.1} parent=39 // pred_check_branch
          %249 = sbr.rel (%p247) target = $region52
        $region51: #{tpu_custom_call.1} parent=39 // pred_region
          %251 = dma.done [#allocation7], 48
        $region52: #{tpu_custom_call.1} parent=39 // pred_fallthru
          _
        %s252 = sand.u32 %s31, 1
        %s253 = scalar_lea.sflag [#allocation4], %s252
        %s254 = sand.u32 %s31, 1
        %s255 = smul.addr %s254, 216
        %s256 = scalar_lea.vmem [#allocation3], %s255
        %p257 = pneg %p44
        %p258 = pneg %p41
        %p259 = pneg %p65
        %p260 = pneg %p62
        %p261 = pneg %p86
        %p262 = pneg %p83
        %p263 = pneg %p107
        %p264 = pneg %p104
        %p265 = pneg %p128
        %p266 = pneg %p125
        %p267 = pneg %p154
        %p268 = pneg %p151
        %s269 = sand.u32 %s141, 1
        %s270 = scalar_lea.sflag [#allocation5], %s269
        %s271 = sand.u32 %s141, 1
        %s272 = smul.addr %s271, 24
        %s273 = scalar_lea.vmem [#allocation9], %s272
        %v274 = vld [vmem:[%s1] sm:$0xff]
        %v275 = vld [vmem:[#allocation6] sm:$0xff]
        %v276 = vld [vmem:[%s3] sm:$0xff]
        %v277 = vld [vmem:[#allocation8] sm:$0x7]
        %vm278 = vcmask 154624
        %279 = vst.msk [vmem:[#allocation2] sm:$0xff] %vm278, 0.0
        %vm280 = vcmask 146432
        %281 = vst.msk [vmem:[#allocation2 + $0x18] sm:$0xff] %vm280, 0.0
        %vm282 = vcmask 138240
        %283 = vst.msk [vmem:[#allocation2 + $0x30] sm:$0xff] %vm282, 0.0
        %vm284 = vcmask 7168
        %285 = vst.msk [vmem:[#allocation2 + $0x48] sm:$0xff] %vm284, 0.0
        %vm286 = vcmask 1048568
        %287 = vst.msk [vmem:[#allocation2 + $0x88] sm:$0xff] %vm286, 0.0
        %vm288 = vcmask 1048440
        %289 = vst.msk [vmem:[#allocation2 + $0xa0] sm:$0xff] %vm288, 0.0
        %vm290 = vcmask 1048432
        %291 = vst.msk [vmem:[#allocation2 + $0xb8] sm:$0xff] %vm290, 0.0
        %vm292 = vcmask 1048424
        %293 = vst.msk [vmem:[#allocation2 + $0xd0] sm:$0xff] %vm292, 0.0
        %v294 = vld [vmem:[%s236] sm:$0xff]
        %v295 = vld [vmem:[%s236 + $0x8] sm:$0xff]
        %v296 = vld [vmem:[%s236 + $0x10] sm:$0xff]
        %v297 = vld [vmem:[%s236 + $0x18] sm:$0xff]
        %v298 = vld [vmem:[%s236 + $0x20] sm:$0xff]
        %v299 = vld [vmem:[%s236 + $0x28] sm:$0xff]
        %v300 = vld [vmem:[%s236 + $0x30] sm:$0xff]
        %v301 = vld [vmem:[%s236 + $0x38] sm:$0xff]
        %v302 = vld [vmem:[%s236 + $0x40] sm:$0xff]
        %v303 = vld [vmem:[%s236 + $0x48] sm:$0xff]
        %v304 = vld [vmem:[%s236 + $0x50] sm:$0xff]
        %v305 = vld [vmem:[%s236 + $0x58] sm:$0xff]
        %v306 = vld [vmem:[%s236 + $0x60] sm:$0xff]
        %v307 = vld [vmem:[%s236 + $0x68] sm:$0xff]
        %v308 = vld [vmem:[%s236 + $0x70] sm:$0xff]
        %v309 = vld [vmem:[%s236 + $0x78] sm:$0xff]
        %v310 = vld [vmem:[%s236 + $0x80] sm:$0xff]
        %v311 = vld [vmem:[%s236 + $0x88] sm:$0xff]
        %v312 = vld [vmem:[%s236 + $0x90] sm:$0xff]
        %v313 = vld [vmem:[%s236 + $0x98] sm:$0xff]
        %v314 = vld [vmem:[%s236 + $0xa0] sm:$0xff]
        %v315 = vld [vmem:[%s236 + $0xa8] sm:$0xff]
        %v316 = vld [vmem:[%s236 + $0xb0] sm:$0xff]
        %v317 = vld [vmem:[%s236 + $0xb8] sm:$0xff]
        %v318 = vld [vmem:[%s236 + $0xc0] sm:$0xff]
        %v319 = vld [vmem:[%s236 + $0xc8] sm:$0xff]
        %v320 = vld [vmem:[%s236 + $0xd0] sm:$0xff]
        %322 = vset.pattern.permute.xlu0 0
        %323 = vperm.xlu0 %322, %v276
        %v324 = vpop.permute.xlu0 %323
        %vm326 = vcmask 588800
        %v328 = vsel %vm326, %v274, 0
        %330 = vmatpush.msra.mxu0 0.0
        %331 = vmatpush.msra.mxu0 0.0
        %332 = vmatpush.msra.mxu0 0.0
        %333 = vmatpush.msra.mxu0 0.0
        %334 = vmatpush.msra.mxu0 0.0
        %335 = vmatpush.msra.mxu0 0.0
        %336 = vmatpush.msra.mxu0 0.0
        %337 = vmatpush.msra.mxu0 %v318
        %338 = vmatpush.msra.mxu0 %v315
        %339 = vmatpush.msra.mxu0 %v312
        %340 = vmatpush.msra.mxu0 %v309
        %341 = vmatpush.msra.mxu0 %v306
        %342 = vmatpush.msra.mxu0 %v303
        %343 = vmatpush.msra.mxu0 %v300
        %344 = vmatpush.msra.mxu0 %v297
        %345 = vmatpush.msra.mxu0 %v294
        %346 = vmatmul.f32.gmra.mxu0 %v328
        %v347 = vpop.f32.mrf.mxu0
        %v348 = vadd.f32 %v324, %v347
        %349 = vdwg.mxu0
        %350 = vmatpush.msra.mxu0 0.0
        %351 = vmatpush.msra.mxu0 0.0
        %352 = vmatpush.msra.mxu0 0.0
        %353 = vmatpush.msra.mxu0 0.0
        %354 = vmatpush.msra.mxu0 0.0
        %355 = vmatpush.msra.mxu0 0.0
        %356 = vmatpush.msra.mxu0 0.0
        %357 = vmatpush.msra.mxu0 %v319
        %358 = vmatpush.msra.mxu0 %v316
        %359 = vmatpush.msra.mxu0 %v313
        %360 = vmatpush.msra.mxu0 %v310
        %361 = vmatpush.msra.mxu0 %v307
        %362 = vmatpush.msra.mxu0 %v304
        %363 = vmatpush.msra.mxu0 %v301
        %364 = vmatpush.msra.mxu0 %v298
        %365 = vmatpush.msra.mxu0 %v295
        %366 = vmatmul.f32.gmra.mxu0 %v328
        %v367 = vpop.f32.mrf.mxu0
        %v368 = vadd.f32 %v324, %v367
        %369 = vdwg.mxu0
        %370 = vmatpush.msra.mxu0 0.0
        %371 = vmatpush.msra.mxu0 0.0
        %372 = vmatpush.msra.mxu0 0.0
        %373 = vmatpush.msra.mxu0 0.0
        %374 = vmatpush.msra.mxu0 0.0
        %375 = vmatpush.msra.mxu0 0.0
        %376 = vmatpush.msra.mxu0 0.0
        %377 = vmatpush.msra.mxu0 %v320
        %378 = vmatpush.msra.mxu0 %v317
        %379 = vmatpush.msra.mxu0 %v314
        %380 = vmatpush.msra.mxu0 %v311
        %381 = vmatpush.msra.mxu0 %v308
        %382 = vmatpush.msra.mxu0 %v305
        %383 = vmatpush.msra.mxu0 %v302
        %384 = vmatpush.msra.mxu0 %v299
        %385 = vmatpush.msra.mxu0 %v296
        %386 = vmatmul.f32.gmra.mxu0 %v328
        %v387 = vpop.f32.mrf.mxu0
        %v388 = vadd.f32 %v324, %v387
        %389 = vdwg.mxu0
        %v390 = vmax.f32 %v348, 0.0
        %v391 = vmax.f32 %v368, 0.0
        %v392 = vmax.f32 %v388, 0.0
        %v394 = vperm.slane %v277, 0
        %v395 = vperm.slane %v277, 1
        %v396 = vperm.slane %v277, 2
        %v400 = vmul.f32 %v390, %v394
        %v401 = vmul.f32 %v391, %v395
        %v402 = vmul.f32 %v392, %v396
        %406 = vrot.lane.b32.xlu0 %v400, 19
        %v407 = vpop.permute.xlu0 %406
        %408 = vrot.lane.b32.xlu0 %v401, 19
        %v409 = vpop.permute.xlu0 %408
        %410 = vrot.lane.b32.xlu0 %v402, 19
        %v411 = vpop.permute.xlu0 %410
        %v412 = vsel %vm278, %v407, %v409
        %v413 = vsel %vm278, %v409, %v411
        %vm417 = vcmask 1047704
        %418 = vst.msk [vmem:[#allocation2] sm:$0xff] %vm417, %v407
        %419 = vst [vmem:[#allocation2 + $0x8] sm:$0xff] %v412
        %420 = vst [vmem:[#allocation2 + $0x10] sm:$0xff] %v413
        %421 = vrot.lane.b32.xlu0 %v400, 18
        %v422 = vpop.permute.xlu0 %421
        %423 = vrot.lane.b32.xlu0 %v401, 18
        %v424 = vpop.permute.xlu0 %423
        %425 = vrot.lane.b32.xlu0 %v402, 18
        %v426 = vpop.permute.xlu0 %425
        %v427 = vsel %vm280, %v422, %v424
        %v428 = vsel %vm280, %v424, %v426
        %vm432 = vcmask 1047696
        %433 = vst.msk [vmem:[#allocation2 + $0x18] sm:$0xff] %vm432, %v422
        %434 = vst [vmem:[#allocation2 + $0x20] sm:$0xff] %v427
        %435 = vst [vmem:[#allocation2 + $0x28] sm:$0xff] %v428
        %436 = vrot.lane.b32.xlu0 %v400, 17
        %v437 = vpop.permute.xlu0 %436
        %438 = vrot.lane.b32.xlu0 %v401, 17
        %v439 = vpop.permute.xlu0 %438
        %440 = vrot.lane.b32.xlu0 %v402, 17
        %v441 = vpop.permute.xlu0 %440
        %v442 = vsel %vm282, %v437, %v439
        %v443 = vsel %vm282, %v439, %v441
        %vm447 = vcmask 1047688
        %448 = vst.msk [vmem:[#allocation2 + $0x30] sm:$0xff] %vm447, %v437
        %449 = vst [vmem:[#allocation2 + $0x38] sm:$0xff] %v442
        %450 = vst [vmem:[#allocation2 + $0x40] sm:$0xff] %v443
        %451 = vrot.lane.b32.xlu0 %v400, 1
        %v452 = vpop.permute.xlu0 %451
        %453 = vrot.lane.b32.xlu0 %v401, 1
        %v454 = vpop.permute.xlu0 %453
        %455 = vrot.lane.b32.xlu0 %v402, 1
        %v456 = vpop.permute.xlu0 %455
        %v457 = vsel %vm284, %v452, %v454
        %v458 = vsel %vm284, %v454, %v456
        %vm462 = vcmask 1047560
        %463 = vst.msk [vmem:[#allocation2 + $0x48] sm:$0xff] %vm462, %v452
        %464 = vst [vmem:[#allocation2 + $0x50] sm:$0xff] %v457
        %465 = vst [vmem:[#allocation2 + $0x58] sm:$0xff] %v458
        %466 = vst [vmem:[#allocation2 + $0x60] sm:$0xff] %v400
        %467 = vst [vmem:[#allocation2 + $0x68] sm:$0xff] %v401
        %468 = vst [vmem:[#allocation2 + $0x70] sm:$0xff] %v402
        %469 = vrot.lane.b32.xlu0 %v400, 127
        %v470 = vpop.permute.xlu0 %469
        %471 = vrot.lane.b32.xlu0 %v401, 127
        %v472 = vpop.permute.xlu0 %471
        %473 = vrot.lane.b32.xlu0 %v402, 127
        %v474 = vpop.permute.xlu0 %473
        %vm475 = vcmask 1039360
        %v476 = vsel %vm475, %v470, %v472
        %v477 = vsel %vm475, %v472, %v474
        %481 = vst [vmem:[#allocation2 + $0x78] sm:$0xff] %v476
        %482 = vst [vmem:[#allocation2 + $0x80] sm:$0xff] %v477
        %483 = vst.msk [vmem:[#allocation2 + $0x88] sm:$0xff] %vm475, %v474
        %484 = vrot.lane.b32.xlu0 %v400, 111
        %v485 = vpop.permute.xlu0 %484
        %486 = vrot.lane.b32.xlu0 %v401, 111
        %v487 = vpop.permute.xlu0 %486
        %488 = vrot.lane.b32.xlu0 %v402, 111
        %v489 = vpop.permute.xlu0 %488
        %vm490 = vcmask 908288
        %v491 = vsel %vm490, %v485, %v487
        %v492 = vsel %vm490, %v487, %v489
        %496 = vst [vmem:[#allocation2 + $0x90] sm:$0xff] %v491
        %497 = vst [vmem:[#allocation2 + $0x98] sm:$0xff] %v492
        %498 = vst.msk [vmem:[#allocation2 + $0xa0] sm:$0xff] %vm490, %v489
        %499 = vrot.lane.b32.xlu0 %v400, 110
        %v500 = vpop.permute.xlu0 %499
        %501 = vrot.lane.b32.xlu0 %v401, 110
        %v502 = vpop.permute.xlu0 %501
        %503 = vrot.lane.b32.xlu0 %v402, 110
        %v504 = vpop.permute.xlu0 %503
        %vm505 = vcmask 900096
        %v506 = vsel %vm505, %v500, %v502
        %v507 = vsel %vm505, %v502, %v504
        %511 = vst [vmem:[#allocation2 + $0xa8] sm:$0xff] %v506
        %512 = vst [vmem:[#allocation2 + $0xb0] sm:$0xff] %v507
        %513 = vst.msk [vmem:[#allocation2 + $0xb8] sm:$0xff] %vm505, %v504
        %514 = vrot.lane.b32.xlu0 %v400, 109
        %v515 = vpop.permute.xlu0 %514
        %516 = vrot.lane.b32.xlu0 %v401, 109
        %v517 = vpop.permute.xlu0 %516
        %518 = vrot.lane.b32.xlu0 %v402, 109
        %v519 = vpop.permute.xlu0 %518
        %vm520 = vcmask 891904
        %v521 = vsel %vm520, %v515, %v517
        %v522 = vsel %vm520, %v517, %v519
        %526 = vst [vmem:[#allocation2 + $0xc0] sm:$0xff] %v521
        %527 = vst [vmem:[#allocation2 + $0xc8] sm:$0xff] %v522
        %528 = vst.msk [vmem:[#allocation2 + $0xd0] sm:$0xff] %vm520, %v519
        %v529 = vld [vmem:[%s236 + $0x60] sm:$0xff]
        %v530 = vld [vmem:[%s236 + $0x68] sm:$0xff]
        %v531 = vld [vmem:[%s236 + $0x70] sm:$0xff]
        %532 = vst [vmem:[#allocation2 + $0xd8] sm:$0xff] %v529
        %533 = vst [vmem:[#allocation2 + $0xe0] sm:$0xff] %v530
        %534 = vst [vmem:[#allocation2 + $0xe8] sm:$0xff] %v531
        %v535 = vld [vmem:[#allocation2] sm:$0xff]
        %v536 = vld [vmem:[#allocation2 + $0x8] sm:$0xff]
        %v537 = vld [vmem:[#allocation2 + $0x10] sm:$0xff]
        %v538 = vld [vmem:[#allocation2 + $0x18] sm:$0xff]
        %v539 = vld [vmem:[#allocation2 + $0x20] sm:$0xff]
        %v540 = vld [vmem:[#allocation2 + $0x28] sm:$0xff]
        %v541 = vld [vmem:[#allocation2 + $0x30] sm:$0xff]
        %v542 = vld [vmem:[#allocation2 + $0x38] sm:$0xff]
        %v543 = vld [vmem:[#allocation2 + $0x40] sm:$0xff]
        %v544 = vld [vmem:[#allocation2 + $0x48] sm:$0xff]
        %v545 = vld [vmem:[#allocation2 + $0x50] sm:$0xff]
        %v546 = vld [vmem:[#allocation2 + $0x58] sm:$0xff]
        %v547 = vld [vmem:[#allocation2 + $0x60] sm:$0xff]
        %v548 = vld [vmem:[#allocation2 + $0x68] sm:$0xff]
        %v549 = vld [vmem:[#allocation2 + $0x70] sm:$0xff]
        %v550 = vld [vmem:[#allocation2 + $0x78] sm:$0xff]
        %v551 = vld [vmem:[#allocation2 + $0x80] sm:$0xff]
        %v552 = vld [vmem:[#allocation2 + $0x88] sm:$0xff]
        %v553 = vld [vmem:[#allocation2 + $0x90] sm:$0xff]
        %v554 = vld [vmem:[#allocation2 + $0x98] sm:$0xff]
        %v555 = vld [vmem:[#allocation2 + $0xa0] sm:$0xff]
        %v556 = vld [vmem:[#allocation2 + $0xa8] sm:$0xff]
        %v557 = vld [vmem:[#allocation2 + $0xb0] sm:$0xff]
        %v558 = vld [vmem:[#allocation2 + $0xb8] sm:$0xff]
        %v559 = vld [vmem:[#allocation2 + $0xc0] sm:$0xff]
        %v560 = vld [vmem:[#allocation2 + $0xc8] sm:$0xff]
        %v561 = vld [vmem:[#allocation2 + $0xd0] sm:$0xff]
        %v562 = vld [vmem:[#allocation2 + $0xd8] sm:$0xff]
        %v563 = vld [vmem:[#allocation2 + $0xe0] sm:$0xff]
        %v564 = vld [vmem:[#allocation2 + $0xe8] sm:$0xff]
        %565 = vset.pattern.permute.xlu0 1
        %566 = vperm.xlu0 %565, %v276
        %v567 = vpop.permute.xlu0 %566
        %vm569 = vcmask 654336
        %v571 = vsel %vm569, %v275, 0
        %573 = vmatpush.msra.mxu0 0.0
        %574 = vmatpush.msra.mxu0 0.0
        %575 = vmatpush.msra.mxu0 0.0
        %576 = vmatpush.msra.mxu0 0.0
        %577 = vmatpush.msra.mxu0 0.0
        %578 = vmatpush.msra.mxu0 0.0
        %579 = vmatpush.msra.mxu0 %v562
        %580 = vmatpush.msra.mxu0 %v559
        %581 = vmatpush.msra.mxu0 %v556
        %582 = vmatpush.msra.mxu0 %v553
        %583 = vmatpush.msra.mxu0 %v550
        %584 = vmatpush.msra.mxu0 %v547
        %585 = vmatpush.msra.mxu0 %v544
        %586 = vmatpush.msra.mxu0 %v541
        %587 = vmatpush.msra.mxu0 %v538
        %588 = vmatpush.msra.mxu0 %v535
        %589 = vmatmul.f32.gmra.mxu0 %v571
        %v590 = vpop.f32.mrf.mxu0
        %v591 = vadd.f32 %v567, %v590
        %592 = vdwg.mxu0
        %593 = vmatpush.msra.mxu0 0.0
        %594 = vmatpush.msra.mxu0 0.0
        %595 = vmatpush.msra.mxu0 0.0
        %596 = vmatpush.msra.mxu0 0.0
        %597 = vmatpush.msra.mxu0 0.0
        %598 = vmatpush.msra.mxu0 0.0
        %599 = vmatpush.msra.mxu0 %v563
        %600 = vmatpush.msra.mxu0 %v560
        %601 = vmatpush.msra.mxu0 %v557
        %602 = vmatpush.msra.mxu0 %v554
        %603 = vmatpush.msra.mxu0 %v551
        %604 = vmatpush.msra.mxu0 %v548
        %605 = vmatpush.msra.mxu0 %v545
        %606 = vmatpush.msra.mxu0 %v542
        %607 = vmatpush.msra.mxu0 %v539
        %608 = vmatpush.msra.mxu0 %v536
        %609 = vmatmul.f32.gmra.mxu0 %v571
        %v610 = vpop.f32.mrf.mxu0
        %v611 = vadd.f32 %v567, %v610
        %612 = vdwg.mxu0
        %613 = vmatpush.msra.mxu0 0.0
        %614 = vmatpush.msra.mxu0 0.0
        %615 = vmatpush.msra.mxu0 0.0
        %616 = vmatpush.msra.mxu0 0.0
        %617 = vmatpush.msra.mxu0 0.0
        %618 = vmatpush.msra.mxu0 0.0
        %619 = vmatpush.msra.mxu0 %v564
        %620 = vmatpush.msra.mxu0 %v561
        %621 = vmatpush.msra.mxu0 %v558
        %622 = vmatpush.msra.mxu0 %v555
        %623 = vmatpush.msra.mxu0 %v552
        %624 = vmatpush.msra.mxu0 %v549
        %625 = vmatpush.msra.mxu0 %v546
        %626 = vmatpush.msra.mxu0 %v543
        %627 = vmatpush.msra.mxu0 %v540
        %628 = vmatpush.msra.mxu0 %v537
        %629 = vmatmul.f32.gmra.mxu0 %v571
        %v630 = vpop.f32.mrf.mxu0
        %v631 = vadd.f32 %v567, %v630
        %632 = vdwg.mxu0
        %v633 = vmax.f32 %v591, 0.0
        %v634 = vmax.f32 %v611, 0.0
        %v635 = vmax.f32 %v631, 0.0
        %636 = vst [vmem:[%s273] sm:$0xff] %v633
        %637 = vst [vmem:[%s273 + $0x8] sm:$0xff] %v634
        %638 = vst [vmem:[%s273 + $0x10] sm:$0xff] %v635
        %s639 = sand.u32 %s141, 1
        %s640 = scalar_lea.sflag [#allocation5], %s639
        %s641 = sand.u32 %s141, 1
        %s642 = smul.addr %s641, 24
        %s643 = scalar_lea.vmem [#allocation9], %s642
        // Predicated region
        $region53: #{tpu_custom_call.1} parent=39 // pred_check
          %p644 = pneg %p151
        $region54: #{tpu_custom_call.1} parent=39 // pred_check_branch
          %646 = sbr.rel (%p644) target = $region56
        $region55: #{tpu_custom_call.1} parent=39 // pred_region
          %648 = vsyncadd %s640, 0
          %s649 = smul.addr %s23, 3
          %s650 = smul.addr %s649, 8
          %s651 = scalar_lea.hbm %s5, %s650
          %s653 = sshll.u32 %s643, 4
          %s654 = int_to_ptr.vmem [resolvable:$true] %s653
          %s655 = sshll.u32 %s651, 4
          %s656 = int_to_ptr.hbm [resolvable:$true] %s655
          %658 = dma.vmem_to_hbm [thread:$0]  %s654, 384, %s656, %s640
        $region56: #{tpu_custom_call.1} parent=39 // pred_fallthru
          _
      $region40: #{tpu_custom_call.1} parent=5 // pred_fallthru
        _
      %p659 = scmp.le.s32.totalorder 2, %s18
      // Predicated region
      $region57: #{tpu_custom_call.1} parent=5 // pred_check
        %p660 = pneg %p659
      $region58: #{tpu_custom_call.1} parent=5 // pred_check_branch
        %662 = sbr.rel (%p660) target = $region60
      $region59: #{tpu_custom_call.1} parent=5 // pred_region
        %s663 = ssub.s32 %s18, 2
        // Predicated region
        $region61: #{tpu_custom_call.1} parent=59 // pred_check
          %p664 = pneg %p157
        $region62: #{tpu_custom_call.1} parent=59 // pred_check_branch
          %666 = sbr.rel (%p664) target = $region64
        $region63: #{tpu_custom_call.1} parent=59 // pred_region
          %s667 = sand.u32 %s142, 1
          %s668 = scalar_lea.sflag [#allocation5], %s667
          %s669 = sand.u32 %s142, 1
          %s670 = smul.addr %s669, 24
          %s671 = scalar_lea.vmem [#allocation9], %s670
          %673 = dma.done %s668, 384
        $region64: #{tpu_custom_call.1} parent=59 // pred_fallthru
          _
      $region60: #{tpu_custom_call.1} parent=5 // pred_fallthru
        _
    $region6: #{tpu_custom_call.1} parent=1 // loop_footer
      %s22 = sadd.s32 1, %s18
    $region7: #{tpu_custom_call.1} parent=1 // loop_footer_branch
      %17 = sbr.rel target = $region3
    $region8: #{tpu_custom_call.1} parent=1 // loop_exit
      _
    %674 = vsyncpa [#allocation4], 1
    %s675 = scalar_lea.sflag [#allocation4], 1
    %676 = vsyncpa %s675, 1
    %677 = vsyncpa [#allocation7], 1
    %678 = vsyncpa [#allocation5], 1
    %s679 = scalar_lea.sflag [#allocation5], 1
    %680 = vsyncpa %s679, 1

</llo_original>
